<compile_context>
chip_gen: v7x
topology: tpu7x:2x2x1
jax: 0.10.0
libtpu: 0.0.40
codegen_flags: <defaults>
</compile_context>

<pallas_src>
import functools

import jax
import jax.numpy as jnp
from jax.experimental import pallas as pl
from jax.experimental.pallas import tpu as pltpu


# ---------------- Pallas kernel (backward scale) ----------------

_MIN_PALLAS_BYTES = 1 << 20       # below this, plain jnp (fusible) beats a kernel launch
_TARGET_BLOCK_BYTES = 4 << 20     # ~4 MiB per block; in+out double-buffered ~= 16 MiB
_VMEM_LIMIT_BYTES = 32 << 20      # explicit scoped-VMEM limit, safe on v5e/v6e/v7x
_LANE_CANDIDATES = (2048, 1024, 512, 256, 128)


def _neg_scale_kernel(g_ref, o_ref, *, neg_lambd):
    # dx = -lambd * grad_output ; neg_lambd is a static Python float, so this
    # lowers to a single VPU multiply-by-immediate per vreg.
    o_ref[...] = g_ref[...] * neg_lambd


def _round_up(x, m):
    return ((x + m - 1) // m) * m


def _sublane_multiple(dtype):
    # Rows per vreg: f32 -> 8, bf16/f16 -> 16, int8/fp8 -> 32.
    return max(8, 32 // jnp.dtype(dtype).itemsize)


def _neg_scale_pallas(g, lambd):
    """Compute -lambd * g with a tiled, lane-dense Pallas kernel."""
    orig_shape = g.shape
    dtype = g.dtype
    itemsize = jnp.dtype(dtype).itemsize
    n = g.size

    # Lane-dense 2-D view (rows, lane). When n % 128 == 0 the reshape is a
    # free bitcast (no extra HBM pad/slice passes); otherwise fall back to a
    # single pad of the flat vector (rare).
    padded = (n % 128) != 0
    if padded:
        lane = 128
        flat = jnp.pad(g.reshape(-1), (0, _round_up(n, 128) - n))
    else:
        lane = next(l for l in _LANE_CANDIDATES if n % l == 0)
        flat = g.reshape(-1)
    rows = flat.size // lane
    g2d = flat.reshape(rows, lane)

    # Row tile: dtype-aware sublane alignment, ~_TARGET_BLOCK_BYTES per block,
    # and >= 2 grid steps when possible (keeps both v7x TensorCores streaming;
    # free on v5e/v6e).
    sub = _sublane_multiple(dtype)
    t = max(sub, (_TARGET_BLOCK_BYTES // (lane * itemsize)) // sub * sub)
    if rows >= 2 * sub:
        t = min(t, _round_up(pl.cdiv(rows, 2), sub))
    if t >= rows:
        tile_rows = rows                      # single full-extent block
    else:
        tile_rows = t                         # multiple of sub; ragged last block masked

    grid = (pl.cdiv(rows, tile_rows),)

    out2d = pl.pallas_call(
        functools.partial(_neg_scale_kernel, neg_lambd=-float(lambd)),
        out_shape=jax.ShapeDtypeStruct((rows, lane), dtype),
        grid=grid,
        in_specs=[pl.BlockSpec((tile_rows, lane), lambda i: (i, 0))],
        out_specs=pl.BlockSpec((tile_rows, lane), lambda i: (i, 0)),
        input_output_aliases={0: 0},          # dx overwrites grad_output in place
        compiler_params=pltpu.CompilerParams(
            dimension_semantics=("parallel",),
            vmem_limit_bytes=_VMEM_LIMIT_BYTES),
    )(g2d)

    out_flat = out2d.reshape(-1)
    if padded:
        out_flat = out_flat[:n]
    return out_flat.reshape(orig_shape)


def _neg_scale(g, lambd):
    # Tiny gradients: skip the custom-call boundary entirely so XLA can fuse
    # the scale into adjacent backward ops.
    if g.size * jnp.dtype(g.dtype).itemsize < _MIN_PALLAS_BYTES:
        return (-float(lambd)) * g
    return _neg_scale_pallas(g, lambd)


# ---------------- custom_vjp wrapper ----------------

@functools.partial(jax.custom_vjp, nondiff_argnums=(1,))
def gradient_reverse(x, lambd=1.0):
    # Forward is a pure identity: no kernel, no HBM traffic.
    return x


def _grl_fwd(x, lambd):
    return x, None


def _grl_bwd(lambd, _, g):
    return (_neg_scale(g, lambd),)


gradient_reverse.defvjp(_grl_fwd, _grl_bwd)


class GradiantReverseLayer:
    """JAX/Pallas equivalent of the PyTorch GradiantReverseLayer."""

    def __init__(self, lambd=1.0):
        self.lambd = float(lambd)

    def __call__(self, x):
        return gradient_reverse(x, self.lambd)


# ---------------- demo ----------------

if __name__ == "__main__":
    key = jax.random.PRNGKey(0)
    k1, k2, k3, k4 = jax.random.split(key, 4)

    # Module-scale input (batch=2, channels=4, 16x16). Forward identity;
    # backward goes through the small-tensor fused-jnp path.
    x = jax.random.normal(k1, (2, 4, 16, 16), dtype=jnp.float32)
    layer = GradiantReverseLayer(lambd=1.0)

    y = jax.block_until_ready(layer(x))
    assert y.shape == x.shape and y.dtype == x.dtype
    assert jnp.allclose(y, x), "forward must be identity"

    g = jax.block_until_ready(jax.grad(lambda t: jnp.sum(layer(t)))(x))
    assert jnp.allclose(g, -jnp.ones_like(x)), "backward must be -lambd * grad"

    layer2 = GradiantReverseLayer(lambd=0.5)
    g2 = jax.block_until_ready(jax.grad(lambda t: jnp.sum(layer2(t) * 2.0))(x))
    assert jnp.allclose(g2, -1.0 * jnp.ones_like(x)), "backward scaling wrong"

    # ---- Pallas path (>= 1 MiB gradients) ----
    lambd = 0.75

    # f32, clean shape -> pad-free path, 2 parallel grid steps.
    g_f32 = jax.random.normal(k2, (512, 1024), dtype=jnp.float32)   # 2 MiB
    exp_f32 = -lambd * g_f32
    out_f32 = jax.block_until_ready(
        jax.jit(lambda t: _neg_scale_pallas(t, lambd))(g_f32))
    assert out_f32.shape == g_f32.shape and out_f32.dtype == g_f32.dtype
    assert jnp.allclose(out_f32, exp_f32, rtol=1e-6, atol=1e-6)

    # bf16 -> dtype-aware (16-row) sublane tiling.
    g_bf16 = jax.random.normal(k3, (256, 2048), dtype=jnp.bfloat16)  # 1 MiB
    exp_bf16 = -lambd * g_bf16
    out_bf16 = jax.block_until_ready(
        jax.jit(lambda t: _neg_scale_pallas(t, lambd))(g_bf16))
    assert out_bf16.dtype == jnp.bfloat16
    assert jnp.allclose(out_bf16.astype(jnp.float32),
                        exp_bf16.astype(jnp.float32), rtol=1e-2, atol=1e-2)

    # Ragged numel (n % 128 != 0) -> rare pad fallback + masked last block.
    g_odd = jax.random.normal(k4, (513, 1023), dtype=jnp.float32)
    exp_odd = -lambd * g_odd
    out_odd = jax.block_until_ready(
        jax.jit(lambda t: _neg_scale_pallas(t, lambd))(g_odd))
    assert jnp.allclose(out_odd, exp_odd, rtol=1e-6, atol=1e-6)

    # End-to-end custom_vjp through the Pallas backward path.
    x_big = jax.random.normal(k2, (512, 1024), dtype=jnp.float32)
    g_big = jax.block_until_ready(
        jax.grad(lambda t: jnp.sum(gradient_reverse(t, 0.5) * 3.0))(x_big))
    assert jnp.allclose(g_big, jnp.full_like(x_big, -1.5))

    print("KERNEL_OK")
</pallas_src>

<mosaic_0001>
module attributes {stable_mosaic.version = 11 : i64} {
  func.func @_neg_scale_kernel(%arg0: i32, %arg1: memref<128x2048xf32, #tpu.memory_space<vmem>>, %arg2: memref<128x2048xf32, #tpu.memory_space<vmem>>) attributes {dimension_semantics = [#tpu.dimension_semantics<parallel>], iteration_bounds = array<i64: 2>, scalar_prefetch = 0 : i64, scratch_operands = 0 : i64, tpu.core_type = #tpu.core_type<tc>, window_params = [{transform_indices = @transform_0, window_bounds = array<i64: 128, 2048>}, {transform_indices = @transform_1, window_bounds = array<i64: 128, 2048>}]} {
    %c0 = arith.constant 0 : index
    %c0_0 = arith.constant 0 : index
    %0 = vector.load %arg1[%c0, %c0_0] : memref<128x2048xf32, #tpu.memory_space<vmem>>, vector<128x2048xf32>
    %cst = arith.constant -7.500000e-01 : f32
    %1 = vector.broadcast %cst : f32 to vector<128x2048xf32>
    %2 = arith.mulf %0, %1 : vector<128x2048xf32>
    %c0_1 = arith.constant 0 : index
    %c0_2 = arith.constant 0 : index
    %3 = vector.load %arg2[%c0_1, %c0_2] : memref<128x2048xf32, #tpu.memory_space<vmem>>, vector<128x2048xf32>
    tpu.vector_store %arg2[%c0_1, %c0_2], %2 {strides = array<i32>} : memref<128x2048xf32, #tpu.memory_space<vmem>>, vector<128x2048xf32>,
    return
  }
  func.func @transform_0(%arg0: i32) -> (i32, i32) {
    %c0_i32 = arith.constant 0 : i32
    %c0_i32_0 = arith.constant 0 : i32
    return %arg0, %c0_i32 : i32, i32
  }
  func.func @transform_1(%arg0: i32) -> (i32, i32) {
    %c0_i32 = arith.constant 0 : i32
    %c0_i32_0 = arith.constant 0 : i32
    return %arg0, %c0_i32 : i32, i32
  }
}

</mosaic_0001>

<llo_original>
// kernel: _lambda_.1
$region0: #{_lambda_.1}
  #allocation0 [shape = 'u32[]', space=smem, size = 0x4, offset = 0x4, fixed_abs, tag = 'smem constant byte address 0x4 - core index']
  #allocation1 [shape = 'u32[144,128]{1,0:T(1,128)}', space=vmem, size = 0x12000, scoped, tag = 'internal scratch']
  %s0 = inlined_call_operand.vmem [shape: f32[256,2048], index: 0, kind: input, shape index: {}, may-alias: {0,1}]
  %s1 = inlined_call_operand.vmem [shape: f32[256,2048], index: 1, kind: output, shape index: {}, may-alias: {0,1}]
  %s2 = sld [smem:[#allocation0]]
  $region37: #{_lambda_.1} parent=0
    _
  %s4 = ssub.s32 1, %s2
  %s5 = scalar_select 0, %s4, %s2
  loop: start=0, step=1, limit=4
  $region2: #{_lambda_.1} parent=0 // loop_pre_header
    _
  $region3: #{_lambda_.1} parent=0 // loop_header
    %s7 = sphi 0, %s11
    %p8 = scmp.ge.s32.totalorder %s7, 4
    %s17 = sphi 0, %s19
    %s20 = sphi 0, %s17
    %s21 = sphi 0, %s20
    %s37 = sphi 0, %s21
    %s43 = sphi 0, %s45
    %s46 = sphi 0, %s43
    %s47 = sphi 0, %s46
    %s63 = sphi 0, %s47
  $region4: #{_lambda_.1} parent=0 // loop_header_branch
    %10 = sbr.rel (%p8) target = $region8
  $region5: #{_lambda_.1} parent=0 // loop_body
    %s12 = ssub.s32 %s7, 1
    %s13 = ssub.s32 %s7, 2
    %s14 = sadd.s32 %s7, 1
    %s15 = ssub.s32 %s7, %s14
    %p16 = scmp.eq.s32.totalorder %s15, 0
    %s18 = sadd.s32 %s17, 1
    %s19 = scalar_select %p16, %s17, %s18
    %p22 = pneg %p16
    %p23 = scmp.eq.s32.totalorder %s7, 1
    %p24 = por %p22, %p23
    %p25 = scmp.ne.s32.totalorder %s17, %s20
    %p26 = scmp.eq.s32.totalorder %s7, 0
    %p27 = por %p25, %p26
    %p28 = scmp.ne.s32.totalorder %s17, %s20
    %p29 = scmp.eq.s32.totalorder %s12, 1
    %p30 = por %p28, %p29
    %p31 = scmp.ne.s32.totalorder %s20, %s21
    %p32 = scmp.eq.s32.totalorder %s12, 0
    %p33 = por %p31, %p32
    %p34 = scmp.ne.s32.totalorder %s20, %s21
    %p35 = scmp.eq.s32.totalorder %s13, 1
    %p36 = por %p34, %p35
    %p38 = scmp.ne.s32.totalorder %s21, %s37
    %p39 = scmp.eq.s32.totalorder %s13, 0
    %p40 = por %p38, %p39
    %s41 = ssub.s32 %s7, %s14
    %p42 = scmp.eq.s32.totalorder %s41, 0
    %s44 = sadd.s32 %s43, 1
    %s45 = scalar_select %p42, %s43, %s44
    %p48 = pneg %p42
    %p49 = scmp.eq.s32.totalorder %s7, 1
    %p50 = por %p48, %p49
    %p51 = scmp.ne.s32.totalorder %s43, %s46
    %p52 = scmp.eq.s32.totalorder %s7, 0
    %p53 = por %p51, %p52
    %p54 = scmp.ne.s32.totalorder %s43, %s46
    %p55 = scmp.eq.s32.totalorder %s12, 1
    %p56 = por %p54, %p55
    %p57 = scmp.ne.s32.totalorder %s46, %s47
    %p58 = scmp.eq.s32.totalorder %s12, 0
    %p59 = por %p57, %p58
    %p60 = scmp.ne.s32.totalorder %s46, %s47
    %p61 = scmp.eq.s32.totalorder %s13, 1
    %p62 = por %p60, %p61
    %p64 = scmp.ne.s32.totalorder %s47, %s63
    %p65 = scmp.eq.s32.totalorder %s13, 0
    %p66 = por %p64, %p65
    %p67 = scmp.le.s32.totalorder 1, %s7
    %p68 = scmp.lt.s32.totalorder %s7, 3
    %p69 = pnand %p67, %p68
    %p70 = pneg %p69
    // Predicated region
    $region9: #{_lambda_.1} parent=5 // pred_check
      _
    $region10: #{_lambda_.1} parent=5 // pred_check_branch
      %72 = sbr.rel (%p69) target = $region12
    $region11: #{_lambda_.1} parent=5 // pred_region
      %s73 = ssub.s32 %s7, 1
    $region12: #{_lambda_.1} parent=5 // pred_fallthru
      _
    %p74 = scmp.lt.s32.totalorder %s7, 2
    // Predicated region
    $region13: #{_lambda_.1} parent=5 // pred_check
      %p75 = pneg %p74
    $region14: #{_lambda_.1} parent=5 // pred_check_branch
      %77 = sbr.rel (%p75) target = $region16
    $region15: #{_lambda_.1} parent=5 // pred_region
      // Predicated region
      $region17: #{_lambda_.1} parent=15 // pred_check
        %p78 = pneg %p27
      $region18: #{_lambda_.1} parent=15 // pred_check_branch
        %80 = sbr.rel (%p78) target = $region20
      $region19: #{_lambda_.1} parent=15 // pred_region
        %s81 = smul.u32 16, %s7
        %p82 = scmp.lt.s32.totalorder %s81, 31
        %s83 = scalar_select %p82, %s81, 31
        %s84 = smul.addr %s83, 16
        %s85 = smul.addr %s84, 8
        %s86 = scalar_lea.vmem %s0, %s85
        %s87 = smul.u32 16, %s7
      $region20: #{_lambda_.1} parent=15 // pred_fallthru
        _
    $region16: #{_lambda_.1} parent=5 // pred_fallthru
      _
    %p88 = scmp.le.s32.totalorder 1, %s7
    %p89 = scmp.lt.s32.totalorder %s7, 3
    %p90 = pnand %p88, %p89
    %p91 = pneg %p90
    // Predicated region
    $region21: #{_lambda_.1} parent=5 // pred_check
      _
    $region22: #{_lambda_.1} parent=5 // pred_check_branch
      %93 = sbr.rel (%p90) target = $region24
    $region23: #{_lambda_.1} parent=5 // pred_region
      %s94 = ssub.s32 %s7, 1
      %s95 = smul.u32 16, %s12
      %p96 = scmp.lt.s32.totalorder %s95, 31
      %s97 = scalar_select %p96, %s95, 31
      %s98 = smul.addr %s97, 16
      %s99 = smul.addr %s98, 8
      %s100 = scalar_lea.vmem %s0, %s99
      %p101 = pneg %p33
      %p102 = pneg %p30
      %p103 = pneg %p59
      %p104 = pneg %p56
      %s105 = smul.u32 16, %s12
      %p106 = scmp.lt.s32.totalorder %s105, 31
      %s107 = scalar_select %p106, %s105, 31
      %s108 = smul.addr %s107, 16
      %s109 = smul.addr %s108, 8
      %s110 = scalar_lea.vmem %s1, %s109
      %s111 = smul.u32 16, %s12
      %p112 = scmp.lt.s32.totalorder %s111, 31
      %s113 = scalar_select %p112, %s111, 31
      %s114 = smul.addr %s113, 16
      %s115 = smul.addr %s114, 8
      %s116 = scalar_lea.vmem %s0, %s115
      %s117 = smul.u32 16, %s12
      %s118 = smul.u32 16, %s12
      %p119 = scmp.lt.s32.totalorder %s118, 31
      %s120 = scalar_select %p119, %s118, 31
      %s121 = smul.addr %s120, 16
      %s122 = smul.addr %s121, 8
      %s123 = scalar_lea.vmem %s1, %s122
      %s124 = smul.u32 16, %s12
      %v125 = vld [vmem:[%s116] sm:$0xff]
      %v126 = vld [vmem:[%s116 + $0x8] sm:$0xff]
      %v127 = vld [vmem:[%s116 + $0x10] sm:$0xff]
      %v128 = vld [vmem:[%s116 + $0x18] sm:$0xff]
      %v129 = vld [vmem:[%s116 + $0x20] sm:$0xff]
      %v130 = vld [vmem:[%s116 + $0x28] sm:$0xff]
      %v131 = vld [vmem:[%s116 + $0x30] sm:$0xff]
      %v132 = vld [vmem:[%s116 + $0x38] sm:$0xff]
      %v133 = vld [vmem:[%s116 + $0x40] sm:$0xff]
      %v134 = vld [vmem:[%s116 + $0x48] sm:$0xff]
      %v135 = vld [vmem:[%s116 + $0x50] sm:$0xff]
      %v136 = vld [vmem:[%s116 + $0x58] sm:$0xff]
      %v137 = vld [vmem:[%s116 + $0x60] sm:$0xff]
      %v138 = vld [vmem:[%s116 + $0x68] sm:$0xff]
      %v139 = vld [vmem:[%s116 + $0x70] sm:$0xff]
      %v140 = vld [vmem:[%s116 + $0x78] sm:$0xff]
      %v141 = vld [vmem:[%s116 + $0x80] sm:$0xff]
      %v142 = vld [vmem:[%s116 + $0x88] sm:$0xff]
      %v143 = vld [vmem:[%s116 + $0x90] sm:$0xff]
      %v144 = vld [vmem:[%s116 + $0x98] sm:$0xff]
      %v145 = vld [vmem:[%s116 + $0xa0] sm:$0xff]
      %v146 = vld [vmem:[%s116 + $0xa8] sm:$0xff]
      %v147 = vld [vmem:[%s116 + $0xb0] sm:$0xff]
      %v148 = vld [vmem:[%s116 + $0xb8] sm:$0xff]
      %v149 = vld [vmem:[%s116 + $0xc0] sm:$0xff]
      %v150 = vld [vmem:[%s116 + $0xc8] sm:$0xff]
      %v151 = vld [vmem:[%s116 + $0xd0] sm:$0xff]
      %v152 = vld [vmem:[%s116 + $0xd8] sm:$0xff]
      %v153 = vld [vmem:[%s116 + $0xe0] sm:$0xff]
      %v154 = vld [vmem:[%s116 + $0xe8] sm:$0xff]
      %v155 = vld [vmem:[%s116 + $0xf0] sm:$0xff]
      %v156 = vld [vmem:[%s116 + $0xf8] sm:$0xff]
      %v157 = vld [vmem:[%s116 + $0x100] sm:$0xff]
      %v158 = vld [vmem:[%s116 + $0x108] sm:$0xff]
      %v159 = vld [vmem:[%s116 + $0x110] sm:$0xff]
      %v160 = vld [vmem:[%s116 + $0x118] sm:$0xff]
      %v161 = vld [vmem:[%s116 + $0x120] sm:$0xff]
      %v162 = vld [vmem:[%s116 + $0x128] sm:$0xff]
      %v163 = vld [vmem:[%s116 + $0x130] sm:$0xff]
      %v164 = vld [vmem:[%s116 + $0x138] sm:$0xff]
      %v165 = vld [vmem:[%s116 + $0x140] sm:$0xff]
      %v166 = vld [vmem:[%s116 + $0x148] sm:$0xff]
      %v167 = vld [vmem:[%s116 + $0x150] sm:$0xff]
      %v168 = vld [vmem:[%s116 + $0x158] sm:$0xff]
      %v169 = vld [vmem:[%s116 + $0x160] sm:$0xff]
      %v170 = vld [vmem:[%s116 + $0x168] sm:$0xff]
      %v171 = vld [vmem:[%s116 + $0x170] sm:$0xff]
      %v172 = vld [vmem:[%s116 + $0x178] sm:$0xff]
      %v173 = vld [vmem:[%s116 + $0x180] sm:$0xff]
      %v174 = vld [vmem:[%s116 + $0x188] sm:$0xff]
      %v175 = vld [vmem:[%s116 + $0x190] sm:$0xff]
      %v176 = vld [vmem:[%s116 + $0x198] sm:$0xff]
      %v177 = vld [vmem:[%s116 + $0x1a0] sm:$0xff]
      %v178 = vld [vmem:[%s116 + $0x1a8] sm:$0xff]
      %v179 = vld [vmem:[%s116 + $0x1b0] sm:$0xff]
      %v180 = vld [vmem:[%s116 + $0x1b8] sm:$0xff]
      %v181 = vld [vmem:[%s116 + $0x1c0] sm:$0xff]
      %v182 = vld [vmem:[%s116 + $0x1c8] sm:$0xff]
      %v183 = vld [vmem:[%s116 + $0x1d0] sm:$0xff]
      %v184 = vld [vmem:[%s116 + $0x1d8] sm:$0xff]
      %v185 = vld [vmem:[%s116 + $0x1e0] sm:$0xff]
      %v186 = vld [vmem:[%s116 + $0x1e8] sm:$0xff]
      %v187 = vld [vmem:[%s116 + $0x1f0] sm:$0xff]
      %v188 = vld [vmem:[%s116 + $0x1f8] sm:$0xff]
      %v189 = vld [vmem:[%s116 + $0x200] sm:$0xff]
      %v190 = vld [vmem:[%s116 + $0x208] sm:$0xff]
      %v191 = vld [vmem:[%s116 + $0x210] sm:$0xff]
      %v192 = vld [vmem:[%s116 + $0x218] sm:$0xff]
      %v193 = vld [vmem:[%s116 + $0x220] sm:$0xff]
      %v194 = vld [vmem:[%s116 + $0x228] sm:$0xff]
      %v195 = vld [vmem:[%s116 + $0x230] sm:$0xff]
      %v196 = vld [vmem:[%s116 + $0x238] sm:$0xff]
      %v197 = vld [vmem:[%s116 + $0x240] sm:$0xff]
      %v198 = vld [vmem:[%s116 + $0x248] sm:$0xff]
      %v199 = vld [vmem:[%s116 + $0x250] sm:$0xff]
      %v200 = vld [vmem:[%s116 + $0x258] sm:$0xff]
      %v201 = vld [vmem:[%s116 + $0x260] sm:$0xff]
      %v202 = vld [vmem:[%s116 + $0x268] sm:$0xff]
      %v203 = vld [vmem:[%s116 + $0x270] sm:$0xff]
      %v204 = vld [vmem:[%s116 + $0x278] sm:$0xff]
      %v205 = vld [vmem:[%s116 + $0x280] sm:$0xff]
      %v206 = vld [vmem:[%s116 + $0x288] sm:$0xff]
      %v207 = vld [vmem:[%s116 + $0x290] sm:$0xff]
      %v208 = vld [vmem:[%s116 + $0x298] sm:$0xff]
      %v209 = vld [vmem:[%s116 + $0x2a0] sm:$0xff]
      %v210 = vld [vmem:[%s116 + $0x2a8] sm:$0xff]
      %v211 = vld [vmem:[%s116 + $0x2b0] sm:$0xff]
      %v212 = vld [vmem:[%s116 + $0x2b8] sm:$0xff]
      %v213 = vld [vmem:[%s116 + $0x2c0] sm:$0xff]
      %v214 = vld [vmem:[%s116 + $0x2c8] sm:$0xff]
      %v215 = vld [vmem:[%s116 + $0x2d0] sm:$0xff]
      %v216 = vld [vmem:[%s116 + $0x2d8] sm:$0xff]
      %v217 = vld [vmem:[%s116 + $0x2e0] sm:$0xff]
      %v218 = vld [vmem:[%s116 + $0x2e8] sm:$0xff]
      %v219 = vld [vmem:[%s116 + $0x2f0] sm:$0xff]
      %v220 = vld [vmem:[%s116 + $0x2f8] sm:$0xff]
      %v221 = vld [vmem:[%s116 + $0x300] sm:$0xff]
      %v222 = vld [vmem:[%s116 + $0x308] sm:$0xff]
      %v223 = vld [vmem:[%s116 + $0x310] sm:$0xff]
      %v224 = vld [vmem:[%s116 + $0x318] sm:$0xff]
      %v225 = vld [vmem:[%s116 + $0x320] sm:$0xff]
      %v226 = vld [vmem:[%s116 + $0x328] sm:$0xff]
      %v227 = vld [vmem:[%s116 + $0x330] sm:$0xff]
      %v228 = vld [vmem:[%s116 + $0x338] sm:$0xff]
      %v229 = vld [vmem:[%s116 + $0x340] sm:$0xff]
      %v230 = vld [vmem:[%s116 + $0x348] sm:$0xff]
      %v231 = vld [vmem:[%s116 + $0x350] sm:$0xff]
      %v232 = vld [vmem:[%s116 + $0x358] sm:$0xff]
      %v233 = vld [vmem:[%s116 + $0x360] sm:$0xff]
      %v234 = vld [vmem:[%s116 + $0x368] sm:$0xff]
      %v235 = vld [vmem:[%s116 + $0x370] sm:$0xff]
      %v236 = vld [vmem:[%s116 + $0x378] sm:$0xff]
      %v237 = vld [vmem:[%s116 + $0x380] sm:$0xff]
      %v238 = vld [vmem:[%s116 + $0x388] sm:$0xff]
      %v239 = vld [vmem:[%s116 + $0x390] sm:$0xff]
      %v240 = vld [vmem:[%s116 + $0x398] sm:$0xff]
      %v241 = vld [vmem:[%s116 + $0x3a0] sm:$0xff]
      %v242 = vld [vmem:[%s116 + $0x3a8] sm:$0xff]
      %v243 = vld [vmem:[%s116 + $0x3b0] sm:$0xff]
      %v244 = vld [vmem:[%s116 + $0x3b8] sm:$0xff]
      %v245 = vld [vmem:[%s116 + $0x3c0] sm:$0xff]
      %v246 = vld [vmem:[%s116 + $0x3c8] sm:$0xff]
      %v247 = vld [vmem:[%s116 + $0x3d0] sm:$0xff]
      %v248 = vld [vmem:[%s116 + $0x3d8] sm:$0xff]
      %v249 = vld [vmem:[%s116 + $0x3e0] sm:$0xff]
      %v250 = vld [vmem:[%s116 + $0x3e8] sm:$0xff]
      %v251 = vld [vmem:[%s116 + $0x3f0] sm:$0xff]
      %v252 = vld [vmem:[%s116 + $0x3f8] sm:$0xff]
      %v253 = vld [vmem:[%s116 + $0x400] sm:$0xff]
      %v254 = vld [vmem:[%s116 + $0x408] sm:$0xff]
      %v255 = vld [vmem:[%s116 + $0x410] sm:$0xff]
      %v256 = vld [vmem:[%s116 + $0x418] sm:$0xff]
      %v257 = vld [vmem:[%s116 + $0x420] sm:$0xff]
      %v258 = vld [vmem:[%s116 + $0x428] sm:$0xff]
      %v259 = vld [vmem:[%s116 + $0x430] sm:$0xff]
      %v260 = vld [vmem:[%s116 + $0x438] sm:$0xff]
      %v261 = vld [vmem:[%s116 + $0x440] sm:$0xff]
      %v262 = vld [vmem:[%s116 + $0x448] sm:$0xff]
      %v263 = vld [vmem:[%s116 + $0x450] sm:$0xff]
      %v264 = vld [vmem:[%s116 + $0x458] sm:$0xff]
      %v265 = vld [vmem:[%s116 + $0x460] sm:$0xff]
      %v266 = vld [vmem:[%s116 + $0x468] sm:$0xff]
      %v267 = vld [vmem:[%s116 + $0x470] sm:$0xff]
      %v268 = vld [vmem:[%s116 + $0x478] sm:$0xff]
      %v269 = vld [vmem:[%s116 + $0x480] sm:$0xff]
      %v270 = vld [vmem:[%s116 + $0x488] sm:$0xff]
      %v271 = vld [vmem:[%s116 + $0x490] sm:$0xff]
      %v272 = vld [vmem:[%s116 + $0x498] sm:$0xff]
      %v273 = vld [vmem:[%s116 + $0x4a0] sm:$0xff]
      %v274 = vld [vmem:[%s116 + $0x4a8] sm:$0xff]
      %v275 = vld [vmem:[%s116 + $0x4b0] sm:$0xff]
      %v276 = vld [vmem:[%s116 + $0x4b8] sm:$0xff]
      %v277 = vld [vmem:[%s116 + $0x4c0] sm:$0xff]
      %v278 = vld [vmem:[%s116 + $0x4c8] sm:$0xff]
      %v279 = vld [vmem:[%s116 + $0x4d0] sm:$0xff]
      %v280 = vld [vmem:[%s116 + $0x4d8] sm:$0xff]
      %v281 = vld [vmem:[%s116 + $0x4e0] sm:$0xff]
      %v282 = vld [vmem:[%s116 + $0x4e8] sm:$0xff]
      %v283 = vld [vmem:[%s116 + $0x4f0] sm:$0xff]
      %v284 = vld [vmem:[%s116 + $0x4f8] sm:$0xff]
      %v285 = vld [vmem:[%s116 + $0x500] sm:$0xff]
      %v286 = vld [vmem:[%s116 + $0x508] sm:$0xff]
      %v287 = vld [vmem:[%s116 + $0x510] sm:$0xff]
      %v288 = vld [vmem:[%s116 + $0x518] sm:$0xff]
      %v289 = vld [vmem:[%s116 + $0x520] sm:$0xff]
      %v290 = vld [vmem:[%s116 + $0x528] sm:$0xff]
      %v291 = vld [vmem:[%s116 + $0x530] sm:$0xff]
      %v292 = vld [vmem:[%s116 + $0x538] sm:$0xff]
      %v293 = vld [vmem:[%s116 + $0x540] sm:$0xff]
      %v294 = vld [vmem:[%s116 + $0x548] sm:$0xff]
      %v295 = vld [vmem:[%s116 + $0x550] sm:$0xff]
      %v296 = vld [vmem:[%s116 + $0x558] sm:$0xff]
      %v297 = vld [vmem:[%s116 + $0x560] sm:$0xff]
      %v298 = vld [vmem:[%s116 + $0x568] sm:$0xff]
      %v299 = vld [vmem:[%s116 + $0x570] sm:$0xff]
      %v300 = vld [vmem:[%s116 + $0x578] sm:$0xff]
      %v301 = vld [vmem:[%s116 + $0x580] sm:$0xff]
      %v302 = vld [vmem:[%s116 + $0x588] sm:$0xff]
      %v303 = vld [vmem:[%s116 + $0x590] sm:$0xff]
      %v304 = vld [vmem:[%s116 + $0x598] sm:$0xff]
      %v305 = vld [vmem:[%s116 + $0x5a0] sm:$0xff]
      %v306 = vld [vmem:[%s116 + $0x5a8] sm:$0xff]
      %v307 = vld [vmem:[%s116 + $0x5b0] sm:$0xff]
      %v308 = vld [vmem:[%s116 + $0x5b8] sm:$0xff]
      %v309 = vld [vmem:[%s116 + $0x5c0] sm:$0xff]
      %v310 = vld [vmem:[%s116 + $0x5c8] sm:$0xff]
      %v311 = vld [vmem:[%s116 + $0x5d0] sm:$0xff]
      %v312 = vld [vmem:[%s116 + $0x5d8] sm:$0xff]
      %v313 = vld [vmem:[%s116 + $0x5e0] sm:$0xff]
      %v314 = vld [vmem:[%s116 + $0x5e8] sm:$0xff]
      %v315 = vld [vmem:[%s116 + $0x5f0] sm:$0xff]
      %v316 = vld [vmem:[%s116 + $0x5f8] sm:$0xff]
      %v317 = vld [vmem:[%s116 + $0x600] sm:$0xff]
      %v318 = vld [vmem:[%s116 + $0x608] sm:$0xff]
      %v319 = vld [vmem:[%s116 + $0x610] sm:$0xff]
      %v320 = vld [vmem:[%s116 + $0x618] sm:$0xff]
      %v321 = vld [vmem:[%s116 + $0x620] sm:$0xff]
      %v322 = vld [vmem:[%s116 + $0x628] sm:$0xff]
      %v323 = vld [vmem:[%s116 + $0x630] sm:$0xff]
      %v324 = vld [vmem:[%s116 + $0x638] sm:$0xff]
      %v325 = vld [vmem:[%s116 + $0x640] sm:$0xff]
      %v326 = vld [vmem:[%s116 + $0x648] sm:$0xff]
      %v327 = vld [vmem:[%s116 + $0x650] sm:$0xff]
      %v328 = vld [vmem:[%s116 + $0x658] sm:$0xff]
      %v329 = vld [vmem:[%s116 + $0x660] sm:$0xff]
      %v330 = vld [vmem:[%s116 + $0x668] sm:$0xff]
      %v331 = vld [vmem:[%s116 + $0x670] sm:$0xff]
      %v332 = vld [vmem:[%s116 + $0x678] sm:$0xff]
      %v333 = vld [vmem:[%s116 + $0x680] sm:$0xff]
      %v334 = vld [vmem:[%s116 + $0x688] sm:$0xff]
      %v335 = vld [vmem:[%s116 + $0x690] sm:$0xff]
      %v336 = vld [vmem:[%s116 + $0x698] sm:$0xff]
      %v337 = vld [vmem:[%s116 + $0x6a0] sm:$0xff]
      %v338 = vld [vmem:[%s116 + $0x6a8] sm:$0xff]
      %v339 = vld [vmem:[%s116 + $0x6b0] sm:$0xff]
      %v340 = vld [vmem:[%s116 + $0x6b8] sm:$0xff]
      %v341 = vld [vmem:[%s116 + $0x6c0] sm:$0xff]
      %v342 = vld [vmem:[%s116 + $0x6c8] sm:$0xff]
      %v343 = vld [vmem:[%s116 + $0x6d0] sm:$0xff]
      %v344 = vld [vmem:[%s116 + $0x6d8] sm:$0xff]
      %v345 = vld [vmem:[%s116 + $0x6e0] sm:$0xff]
      %v346 = vld [vmem:[%s116 + $0x6e8] sm:$0xff]
      %v347 = vld [vmem:[%s116 + $0x6f0] sm:$0xff]
      %v348 = vld [vmem:[%s116 + $0x6f8] sm:$0xff]
      %v349 = vld [vmem:[%s116 + $0x700] sm:$0xff]
      %v350 = vld [vmem:[%s116 + $0x708] sm:$0xff]
      %v351 = vld [vmem:[%s116 + $0x710] sm:$0xff]
      %v352 = vld [vmem:[%s116 + $0x718] sm:$0xff]
      %v353 = vld [vmem:[%s116 + $0x720] sm:$0xff]
      %v354 = vld [vmem:[%s116 + $0x728] sm:$0xff]
      %v355 = vld [vmem:[%s116 + $0x730] sm:$0xff]
      %v356 = vld [vmem:[%s116 + $0x738] sm:$0xff]
      %v357 = vld [vmem:[%s116 + $0x740] sm:$0xff]
      %v358 = vld [vmem:[%s116 + $0x748] sm:$0xff]
      %v359 = vld [vmem:[%s116 + $0x750] sm:$0xff]
      %v360 = vld [vmem:[%s116 + $0x758] sm:$0xff]
      %v361 = vld [vmem:[%s116 + $0x760] sm:$0xff]
      %v362 = vld [vmem:[%s116 + $0x768] sm:$0xff]
      %v363 = vld [vmem:[%s116 + $0x770] sm:$0xff]
      %v364 = vld [vmem:[%s116 + $0x778] sm:$0xff]
      %v365 = vld [vmem:[%s116 + $0x780] sm:$0xff]
      %v366 = vld [vmem:[%s116 + $0x788] sm:$0xff]
      %v367 = vld [vmem:[%s116 + $0x790] sm:$0xff]
      %v368 = vld [vmem:[%s116 + $0x798] sm:$0xff]
      %v369 = vld [vmem:[%s116 + $0x7a0] sm:$0xff]
      %v370 = vld [vmem:[%s116 + $0x7a8] sm:$0xff]
      %v371 = vld [vmem:[%s116 + $0x7b0] sm:$0xff]
      %v372 = vld [vmem:[%s116 + $0x7b8] sm:$0xff]
      %v373 = vld [vmem:[%s116 + $0x7c0] sm:$0xff]
      %v374 = vld [vmem:[%s116 + $0x7c8] sm:$0xff]
      %v375 = vld [vmem:[%s116 + $0x7d0] sm:$0xff]
      %v376 = vld [vmem:[%s116 + $0x7d8] sm:$0xff]
      %v377 = vld [vmem:[%s116 + $0x7e0] sm:$0xff]
      %v378 = vld [vmem:[%s116 + $0x7e8] sm:$0xff]
      %v379 = vld [vmem:[%s116 + $0x7f0] sm:$0xff]
      %v380 = vld [vmem:[%s116 + $0x7f8] sm:$0xff]
      %v381 = vmul.f32 %v125, -0.75
      %v382 = vmul.f32 %v126, -0.75
      %v383 = vmul.f32 %v127, -0.75
      %v384 = vmul.f32 %v128, -0.75
      %v385 = vmul.f32 %v129, -0.75
      %v386 = vmul.f32 %v130, -0.75
      %v387 = vmul.f32 %v131, -0.75
      %v388 = vmul.f32 %v132, -0.75
      %v389 = vmul.f32 %v133, -0.75
      %v390 = vmul.f32 %v134, -0.75
      %v391 = vmul.f32 %v135, -0.75
      %v392 = vmul.f32 %v136, -0.75
      %v393 = vmul.f32 %v137, -0.75
      %v394 = vmul.f32 %v138, -0.75
      %v395 = vmul.f32 %v139, -0.75
      %v396 = vmul.f32 %v140, -0.75
      %v397 = vmul.f32 %v141, -0.75
      %v398 = vmul.f32 %v142, -0.75
      %v399 = vmul.f32 %v143, -0.75
      %v400 = vmul.f32 %v144, -0.75
      %v401 = vmul.f32 %v145, -0.75
      %v402 = vmul.f32 %v146, -0.75
      %v403 = vmul.f32 %v147, -0.75
      %v404 = vmul.f32 %v148, -0.75
      %v405 = vmul.f32 %v149, -0.75
      %v406 = vmul.f32 %v150, -0.75
      %v407 = vmul.f32 %v151, -0.75
      %v408 = vmul.f32 %v152, -0.75
      %v409 = vmul.f32 %v153, -0.75
      %v410 = vmul.f32 %v154, -0.75
      %v411 = vmul.f32 %v155, -0.75
      %v412 = vmul.f32 %v156, -0.75
      %v413 = vmul.f32 %v157, -0.75
      %v414 = vmul.f32 %v158, -0.75
      %v415 = vmul.f32 %v159, -0.75
      %v416 = vmul.f32 %v160, -0.75
      %v417 = vmul.f32 %v161, -0.75
      %v418 = vmul.f32 %v162, -0.75
      %v419 = vmul.f32 %v163, -0.75
      %v420 = vmul.f32 %v164, -0.75
      %v421 = vmul.f32 %v165, -0.75
      %v422 = vmul.f32 %v166, -0.75
      %v423 = vmul.f32 %v167, -0.75
      %v424 = vmul.f32 %v168, -0.75
      %v425 = vmul.f32 %v169, -0.75
      %v426 = vmul.f32 %v170, -0.75
      %v427 = vmul.f32 %v171, -0.75
      %v428 = vmul.f32 %v172, -0.75
      %v429 = vmul.f32 %v173, -0.75
      %v430 = vmul.f32 %v174, -0.75
      %v431 = vmul.f32 %v175, -0.75
      %v432 = vmul.f32 %v176, -0.75
      %v433 = vmul.f32 %v177, -0.75
      %v434 = vmul.f32 %v178, -0.75
      %v435 = vmul.f32 %v179, -0.75
      %v436 = vmul.f32 %v180, -0.75
      %v437 = vmul.f32 %v181, -0.75
      %v438 = vmul.f32 %v182, -0.75
      %v439 = vmul.f32 %v183, -0.75
      %v440 = vmul.f32 %v184, -0.75
      %v441 = vmul.f32 %v185, -0.75
      %v442 = vmul.f32 %v186, -0.75
      %v443 = vmul.f32 %v187, -0.75
      %v444 = vmul.f32 %v188, -0.75
      %v445 = vmul.f32 %v189, -0.75
      %v446 = vmul.f32 %v190, -0.75
      %v447 = vmul.f32 %v191, -0.75
      %v448 = vmul.f32 %v192, -0.75
      %v449 = vmul.f32 %v193, -0.75
      %v450 = vmul.f32 %v194, -0.75
      %v451 = vmul.f32 %v195, -0.75
      %v452 = vmul.f32 %v196, -0.75
      %v453 = vmul.f32 %v197, -0.75
      %v454 = vmul.f32 %v198, -0.75
      %v455 = vmul.f32 %v199, -0.75
      %v456 = vmul.f32 %v200, -0.75
      %v457 = vmul.f32 %v201, -0.75
      %v458 = vmul.f32 %v202, -0.75
      %v459 = vmul.f32 %v203, -0.75
      %v460 = vmul.f32 %v204, -0.75
      %v461 = vmul.f32 %v205, -0.75
      %v462 = vmul.f32 %v206, -0.75
      %v463 = vmul.f32 %v207, -0.75
      %v464 = vmul.f32 %v208, -0.75
      %v465 = vmul.f32 %v209, -0.75
      %v466 = vmul.f32 %v210, -0.75
      %v467 = vmul.f32 %v211, -0.75
      %v468 = vmul.f32 %v212, -0.75
      %v469 = vmul.f32 %v213, -0.75
      %v470 = vmul.f32 %v214, -0.75
      %v471 = vmul.f32 %v215, -0.75
      %v472 = vmul.f32 %v216, -0.75
      %v473 = vmul.f32 %v217, -0.75
      %v474 = vmul.f32 %v218, -0.75
      %v475 = vmul.f32 %v219, -0.75
      %v476 = vmul.f32 %v220, -0.75
      %v477 = vmul.f32 %v221, -0.75
      %v478 = vmul.f32 %v222, -0.75
      %v479 = vmul.f32 %v223, -0.75
      %v480 = vmul.f32 %v224, -0.75
      %v481 = vmul.f32 %v225, -0.75
      %v482 = vmul.f32 %v226, -0.75
      %v483 = vmul.f32 %v227, -0.75
      %v484 = vmul.f32 %v228, -0.75
      %v485 = vmul.f32 %v229, -0.75
      %v486 = vmul.f32 %v230, -0.75
      %v487 = vmul.f32 %v231, -0.75
      %v488 = vmul.f32 %v232, -0.75
      %v489 = vmul.f32 %v233, -0.75
      %v490 = vmul.f32 %v234, -0.75
      %v491 = vmul.f32 %v235, -0.75
      %v492 = vmul.f32 %v236, -0.75
      %v493 = vmul.f32 %v237, -0.75
      %v494 = vmul.f32 %v238, -0.75
      %v495 = vmul.f32 %v239, -0.75
      %v496 = vmul.f32 %v240, -0.75
      %v497 = vmul.f32 %v241, -0.75
      %v498 = vmul.f32 %v242, -0.75
      %v499 = vmul.f32 %v243, -0.75
      %v500 = vmul.f32 %v244, -0.75
      %v501 = vmul.f32 %v245, -0.75
      %v502 = vmul.f32 %v246, -0.75
      %v503 = vmul.f32 %v247, -0.75
      %v504 = vmul.f32 %v248, -0.75
      %v505 = vmul.f32 %v249, -0.75
      %v506 = vmul.f32 %v250, -0.75
      %v507 = vmul.f32 %v251, -0.75
      %v508 = vmul.f32 %v252, -0.75
      %v509 = vmul.f32 %v253, -0.75
      %v510 = vmul.f32 %v254, -0.75
      %v511 = vmul.f32 %v255, -0.75
      %v512 = vmul.f32 %v256, -0.75
      %v513 = vmul.f32 %v257, -0.75
      %v514 = vmul.f32 %v258, -0.75
      %v515 = vmul.f32 %v259, -0.75
      %v516 = vmul.f32 %v260, -0.75
      %v517 = vmul.f32 %v261, -0.75
      %v518 = vmul.f32 %v262, -0.75
      %v519 = vmul.f32 %v263, -0.75
      %v520 = vmul.f32 %v264, -0.75
      %v521 = vmul.f32 %v265, -0.75
      %v522 = vmul.f32 %v266, -0.75
      %v523 = vmul.f32 %v267, -0.75
      %v524 = vmul.f32 %v268, -0.75
      %v525 = vmul.f32 %v269, -0.75
      %v526 = vmul.f32 %v270, -0.75
      %v527 = vmul.f32 %v271, -0.75
      %v528 = vmul.f32 %v272, -0.75
      %v529 = vmul.f32 %v273, -0.75
      %v530 = vmul.f32 %v274, -0.75
      %v531 = vmul.f32 %v275, -0.75
      %v532 = vmul.f32 %v276, -0.75
      %v533 = vmul.f32 %v277, -0.75
      %v534 = vmul.f32 %v278, -0.75
      %v535 = vmul.f32 %v279, -0.75
      %v536 = vmul.f32 %v280, -0.75
      %v537 = vmul.f32 %v281, -0.75
      %v538 = vmul.f32 %v282, -0.75
      %v539 = vmul.f32 %v283, -0.75
      %v540 = vmul.f32 %v284, -0.75
      %v541 = vmul.f32 %v285, -0.75
      %v542 = vmul.f32 %v286, -0.75
      %v543 = vmul.f32 %v287, -0.75
      %v544 = vmul.f32 %v288, -0.75
      %v545 = vmul.f32 %v289, -0.75
      %v546 = vmul.f32 %v290, -0.75
      %v547 = vmul.f32 %v291, -0.75
      %v548 = vmul.f32 %v292, -0.75
      %v549 = vmul.f32 %v293, -0.75
      %v550 = vmul.f32 %v294, -0.75
      %v551 = vmul.f32 %v295, -0.75
      %v552 = vmul.f32 %v296, -0.75
      %v553 = vmul.f32 %v297, -0.75
      %v554 = vmul.f32 %v298, -0.75
      %v555 = vmul.f32 %v299, -0.75
      %v556 = vmul.f32 %v300, -0.75
      %v557 = vmul.f32 %v301, -0.75
      %v558 = vmul.f32 %v302, -0.75
      %v559 = vmul.f32 %v303, -0.75
      %v560 = vmul.f32 %v304, -0.75
      %v561 = vmul.f32 %v305, -0.75
      %v562 = vmul.f32 %v306, -0.75
      %v563 = vmul.f32 %v307, -0.75
      %v564 = vmul.f32 %v308, -0.75
      %v565 = vmul.f32 %v309, -0.75
      %v566 = vmul.f32 %v310, -0.75
      %v567 = vmul.f32 %v311, -0.75
      %v568 = vmul.f32 %v312, -0.75
      %v569 = vmul.f32 %v313, -0.75
      %v570 = vmul.f32 %v314, -0.75
      %v571 = vmul.f32 %v315, -0.75
      %v572 = vmul.f32 %v316, -0.75
      %v573 = vmul.f32 %v317, -0.75
      %v574 = vmul.f32 %v318, -0.75
      %v575 = vmul.f32 %v319, -0.75
      %v576 = vmul.f32 %v320, -0.75
      %v577 = vmul.f32 %v321, -0.75
      %v578 = vmul.f32 %v322, -0.75
      %v579 = vmul.f32 %v323, -0.75
      %v580 = vmul.f32 %v324, -0.75
      %v581 = vmul.f32 %v325, -0.75
      %v582 = vmul.f32 %v326, -0.75
      %v583 = vmul.f32 %v327, -0.75
      %v584 = vmul.f32 %v328, -0.75
      %v585 = vmul.f32 %v329, -0.75
      %v586 = vmul.f32 %v330, -0.75
      %v587 = vmul.f32 %v331, -0.75
      %v588 = vmul.f32 %v332, -0.75
      %v589 = vmul.f32 %v333, -0.75
      %v590 = vmul.f32 %v334, -0.75
      %v591 = vmul.f32 %v335, -0.75
      %v592 = vmul.f32 %v336, -0.75
      %v593 = vmul.f32 %v337, -0.75
      %v594 = vmul.f32 %v338, -0.75
      %v595 = vmul.f32 %v339, -0.75
      %v596 = vmul.f32 %v340, -0.75
      %v597 = vmul.f32 %v341, -0.75
      %v598 = vmul.f32 %v342, -0.75
      %v599 = vmul.f32 %v343, -0.75
      %v600 = vmul.f32 %v344, -0.75
      %v601 = vmul.f32 %v345, -0.75
      %v602 = vmul.f32 %v346, -0.75
      %v603 = vmul.f32 %v347, -0.75
      %v604 = vmul.f32 %v348, -0.75
      %v605 = vmul.f32 %v349, -0.75
      %v606 = vmul.f32 %v350, -0.75
      %v607 = vmul.f32 %v351, -0.75
      %v608 = vmul.f32 %v352, -0.75
      %v609 = vmul.f32 %v353, -0.75
      %v610 = vmul.f32 %v354, -0.75
      %v611 = vmul.f32 %v355, -0.75
      %v612 = vmul.f32 %v356, -0.75
      %v613 = vmul.f32 %v357, -0.75
      %v614 = vmul.f32 %v358, -0.75
      %v615 = vmul.f32 %v359, -0.75
      %v616 = vmul.f32 %v360, -0.75
      %v617 = vmul.f32 %v361, -0.75
      %v618 = vmul.f32 %v362, -0.75
      %v619 = vmul.f32 %v363, -0.75
      %v620 = vmul.f32 %v364, -0.75
      %v621 = vmul.f32 %v365, -0.75
      %v622 = vmul.f32 %v366, -0.75
      %v623 = vmul.f32 %v367, -0.75
      %v624 = vmul.f32 %v368, -0.75
      %v625 = vmul.f32 %v369, -0.75
      %v626 = vmul.f32 %v370, -0.75
      %v627 = vmul.f32 %v371, -0.75
      %v628 = vmul.f32 %v372, -0.75
      %v629 = vmul.f32 %v373, -0.75
      %v630 = vmul.f32 %v374, -0.75
      %v631 = vmul.f32 %v375, -0.75
      %v632 = vmul.f32 %v376, -0.75
      %v633 = vmul.f32 %v377, -0.75
      %v634 = vmul.f32 %v378, -0.75
      %v635 = vmul.f32 %v379, -0.75
      %v636 = vmul.f32 %v380, -0.75
      %637 = vst [vmem:[%s123] sm:$0xff] %v381
      %638 = vst [vmem:[%s123 + $0x8] sm:$0xff] %v382
      %639 = vst [vmem:[%s123 + $0x10] sm:$0xff] %v383
      %640 = vst [vmem:[%s123 + $0x18] sm:$0xff] %v384
      %641 = vst [vmem:[%s123 + $0x20] sm:$0xff] %v385
      %642 = vst [vmem:[%s123 + $0x28] sm:$0xff] %v386
      %643 = vst [vmem:[%s123 + $0x30] sm:$0xff] %v387
      %644 = vst [vmem:[%s123 + $0x38] sm:$0xff] %v388
      %645 = vst [vmem:[%s123 + $0x40] sm:$0xff] %v389
      %646 = vst [vmem:[%s123 + $0x48] sm:$0xff] %v390
      %647 = vst [vmem:[%s123 + $0x50] sm:$0xff] %v391
      %648 = vst [vmem:[%s123 + $0x58] sm:$0xff] %v392
      %649 = vst [vmem:[%s123 + $0x60] sm:$0xff] %v393
      %650 = vst [vmem:[%s123 + $0x68] sm:$0xff] %v394
      %651 = vst [vmem:[%s123 + $0x70] sm:$0xff] %v395
      %652 = vst [vmem:[%s123 + $0x78] sm:$0xff] %v396
      %653 = vst [vmem:[%s123 + $0x80] sm:$0xff] %v397
      %654 = vst [vmem:[%s123 + $0x88] sm:$0xff] %v398
      %655 = vst [vmem:[%s123 + $0x90] sm:$0xff] %v399
      %656 = vst [vmem:[%s123 + $0x98] sm:$0xff] %v400
      %657 = vst [vmem:[%s123 + $0xa0] sm:$0xff] %v401
      %658 = vst [vmem:[%s123 + $0xa8] sm:$0xff] %v402
      %659 = vst [vmem:[%s123 + $0xb0] sm:$0xff] %v403
      %660 = vst [vmem:[%s123 + $0xb8] sm:$0xff] %v404
      %661 = vst [vmem:[%s123 + $0xc0] sm:$0xff] %v405
      %662 = vst [vmem:[%s123 + $0xc8] sm:$0xff] %v406
      %663 = vst [vmem:[%s123 + $0xd0] sm:$0xff] %v407
      %664 = vst [vmem:[%s123 + $0xd8] sm:$0xff] %v408
      %665 = vst [vmem:[%s123 + $0xe0] sm:$0xff] %v409
      %666 = vst [vmem:[%s123 + $0xe8] sm:$0xff] %v410
      %667 = vst [vmem:[%s123 + $0xf0] sm:$0xff] %v411
      %668 = vst [vmem:[%s123 + $0xf8] sm:$0xff] %v412
      %669 = vst [vmem:[%s123 + $0x100] sm:$0xff] %v413
      %670 = vst [vmem:[%s123 + $0x108] sm:$0xff] %v414
      %671 = vst [vmem:[%s123 + $0x110] sm:$0xff] %v415
      %672 = vst [vmem:[%s123 + $0x118] sm:$0xff] %v416
      %673 = vst [vmem:[%s123 + $0x120] sm:$0xff] %v417
      %674 = vst [vmem:[%s123 + $0x128] sm:$0xff] %v418
      %675 = vst [vmem:[%s123 + $0x130] sm:$0xff] %v419
      %676 = vst [vmem:[%s123 + $0x138] sm:$0xff] %v420
      %677 = vst [vmem:[%s123 + $0x140] sm:$0xff] %v421
      %678 = vst [vmem:[%s123 + $0x148] sm:$0xff] %v422
      %679 = vst [vmem:[%s123 + $0x150] sm:$0xff] %v423
      %680 = vst [vmem:[%s123 + $0x158] sm:$0xff] %v424
      %681 = vst [vmem:[%s123 + $0x160] sm:$0xff] %v425
      %682 = vst [vmem:[%s123 + $0x168] sm:$0xff] %v426
      %683 = vst [vmem:[%s123 + $0x170] sm:$0xff] %v427
      %684 = vst [vmem:[%s123 + $0x178] sm:$0xff] %v428
      %685 = vst [vmem:[%s123 + $0x180] sm:$0xff] %v429
      %686 = vst [vmem:[%s123 + $0x188] sm:$0xff] %v430
      %687 = vst [vmem:[%s123 + $0x190] sm:$0xff] %v431
      %688 = vst [vmem:[%s123 + $0x198] sm:$0xff] %v432
      %689 = vst [vmem:[%s123 + $0x1a0] sm:$0xff] %v433
      %690 = vst [vmem:[%s123 + $0x1a8] sm:$0xff] %v434
      %691 = vst [vmem:[%s123 + $0x1b0] sm:$0xff] %v435
      %692 = vst [vmem:[%s123 + $0x1b8] sm:$0xff] %v436
      %693 = vst [vmem:[%s123 + $0x1c0] sm:$0xff] %v437
      %694 = vst [vmem:[%s123 + $0x1c8] sm:$0xff] %v438
      %695 = vst [vmem:[%s123 + $0x1d0] sm:$0xff] %v439
      %696 = vst [vmem:[%s123 + $0x1d8] sm:$0xff] %v440
      %697 = vst [vmem:[%s123 + $0x1e0] sm:$0xff] %v441
      %698 = vst [vmem:[%s123 + $0x1e8] sm:$0xff] %v442
      %699 = vst [vmem:[%s123 + $0x1f0] sm:$0xff] %v443
      %700 = vst [vmem:[%s123 + $0x1f8] sm:$0xff] %v444
      %701 = vst [vmem:[%s123 + $0x200] sm:$0xff] %v445
      %702 = vst [vmem:[%s123 + $0x208] sm:$0xff] %v446
      %703 = vst [vmem:[%s123 + $0x210] sm:$0xff] %v447
      %704 = vst [vmem:[%s123 + $0x218] sm:$0xff] %v448
      %705 = vst [vmem:[%s123 + $0x220] sm:$0xff] %v449
      %706 = vst [vmem:[%s123 + $0x228] sm:$0xff] %v450
      %707 = vst [vmem:[%s123 + $0x230] sm:$0xff] %v451
      %708 = vst [vmem:[%s123 + $0x238] sm:$0xff] %v452
      %709 = vst [vmem:[%s123 + $0x240] sm:$0xff] %v453
      %710 = vst [vmem:[%s123 + $0x248] sm:$0xff] %v454
      %711 = vst [vmem:[%s123 + $0x250] sm:$0xff] %v455
      %712 = vst [vmem:[%s123 + $0x258] sm:$0xff] %v456
      %713 = vst [vmem:[%s123 + $0x260] sm:$0xff] %v457
      %714 = vst [vmem:[%s123 + $0x268] sm:$0xff] %v458
      %715 = vst [vmem:[%s123 + $0x270] sm:$0xff] %v459
      %716 = vst [vmem:[%s123 + $0x278] sm:$0xff] %v460
      %717 = vst [vmem:[%s123 + $0x280] sm:$0xff] %v461
      %718 = vst [vmem:[%s123 + $0x288] sm:$0xff] %v462
      %719 = vst [vmem:[%s123 + $0x290] sm:$0xff] %v463
      %720 = vst [vmem:[%s123 + $0x298] sm:$0xff] %v464
      %721 = vst [vmem:[%s123 + $0x2a0] sm:$0xff] %v465
      %722 = vst [vmem:[%s123 + $0x2a8] sm:$0xff] %v466
      %723 = vst [vmem:[%s123 + $0x2b0] sm:$0xff] %v467
      %724 = vst [vmem:[%s123 + $0x2b8] sm:$0xff] %v468
      %725 = vst [vmem:[%s123 + $0x2c0] sm:$0xff] %v469
      %726 = vst [vmem:[%s123 + $0x2c8] sm:$0xff] %v470
      %727 = vst [vmem:[%s123 + $0x2d0] sm:$0xff] %v471
      %728 = vst [vmem:[%s123 + $0x2d8] sm:$0xff] %v472
      %729 = vst [vmem:[%s123 + $0x2e0] sm:$0xff] %v473
      %730 = vst [vmem:[%s123 + $0x2e8] sm:$0xff] %v474
      %731 = vst [vmem:[%s123 + $0x2f0] sm:$0xff] %v475
      %732 = vst [vmem:[%s123 + $0x2f8] sm:$0xff] %v476
      %733 = vst [vmem:[%s123 + $0x300] sm:$0xff] %v477
      %734 = vst [vmem:[%s123 + $0x308] sm:$0xff] %v478
      %735 = vst [vmem:[%s123 + $0x310] sm:$0xff] %v479
      %736 = vst [vmem:[%s123 + $0x318] sm:$0xff] %v480
      %737 = vst [vmem:[%s123 + $0x320] sm:$0xff] %v481
      %738 = vst [vmem:[%s123 + $0x328] sm:$0xff] %v482
      %739 = vst [vmem:[%s123 + $0x330] sm:$0xff] %v483
      %740 = vst [vmem:[%s123 + $0x338] sm:$0xff] %v484
      %741 = vst [vmem:[%s123 + $0x340] sm:$0xff] %v485
      %742 = vst [vmem:[%s123 + $0x348] sm:$0xff] %v486
      %743 = vst [vmem:[%s123 + $0x350] sm:$0xff] %v487
      %744 = vst [vmem:[%s123 + $0x358] sm:$0xff] %v488
      %745 = vst [vmem:[%s123 + $0x360] sm:$0xff] %v489
      %746 = vst [vmem:[%s123 + $0x368] sm:$0xff] %v490
      %747 = vst [vmem:[%s123 + $0x370] sm:$0xff] %v491
      %748 = vst [vmem:[%s123 + $0x378] sm:$0xff] %v492
      %749 = vst [vmem:[%s123 + $0x380] sm:$0xff] %v493
      %750 = vst [vmem:[%s123 + $0x388] sm:$0xff] %v494
      %751 = vst [vmem:[%s123 + $0x390] sm:$0xff] %v495
      %752 = vst [vmem:[%s123 + $0x398] sm:$0xff] %v496
      %753 = vst [vmem:[%s123 + $0x3a0] sm:$0xff] %v497
      %754 = vst [vmem:[%s123 + $0x3a8] sm:$0xff] %v498
      %755 = vst [vmem:[%s123 + $0x3b0] sm:$0xff] %v499
      %756 = vst [vmem:[%s123 + $0x3b8] sm:$0xff] %v500
      %757 = vst [vmem:[%s123 + $0x3c0] sm:$0xff] %v501
      %758 = vst [vmem:[%s123 + $0x3c8] sm:$0xff] %v502
      %759 = vst [vmem:[%s123 + $0x3d0] sm:$0xff] %v503
      %760 = vst [vmem:[%s123 + $0x3d8] sm:$0xff] %v504
      %761 = vst [vmem:[%s123 + $0x3e0] sm:$0xff] %v505
      %762 = vst [vmem:[%s123 + $0x3e8] sm:$0xff] %v506
      %763 = vst [vmem:[%s123 + $0x3f0] sm:$0xff] %v507
      %764 = vst [vmem:[%s123 + $0x3f8] sm:$0xff] %v508
      %765 = vst [vmem:[%s123 + $0x400] sm:$0xff] %v509
      %766 = vst [vmem:[%s123 + $0x408] sm:$0xff] %v510
      %767 = vst [vmem:[%s123 + $0x410] sm:$0xff] %v511
      %768 = vst [vmem:[%s123 + $0x418] sm:$0xff] %v512
      %769 = vst [vmem:[%s123 + $0x420] sm:$0xff] %v513
      %770 = vst [vmem:[%s123 + $0x428] sm:$0xff] %v514
      %771 = vst [vmem:[%s123 + $0x430] sm:$0xff] %v515
      %772 = vst [vmem:[%s123 + $0x438] sm:$0xff] %v516
      %773 = vst [vmem:[%s123 + $0x440] sm:$0xff] %v517
      %774 = vst [vmem:[%s123 + $0x448] sm:$0xff] %v518
      %775 = vst [vmem:[%s123 + $0x450] sm:$0xff] %v519
      %776 = vst [vmem:[%s123 + $0x458] sm:$0xff] %v520
      %777 = vst [vmem:[%s123 + $0x460] sm:$0xff] %v521
      %778 = vst [vmem:[%s123 + $0x468] sm:$0xff] %v522
      %779 = vst [vmem:[%s123 + $0x470] sm:$0xff] %v523
      %780 = vst [vmem:[%s123 + $0x478] sm:$0xff] %v524
      %781 = vst [vmem:[%s123 + $0x480] sm:$0xff] %v525
      %782 = vst [vmem:[%s123 + $0x488] sm:$0xff] %v526
      %783 = vst [vmem:[%s123 + $0x490] sm:$0xff] %v527
      %784 = vst [vmem:[%s123 + $0x498] sm:$0xff] %v528
      %785 = vst [vmem:[%s123 + $0x4a0] sm:$0xff] %v529
      %786 = vst [vmem:[%s123 + $0x4a8] sm:$0xff] %v530
      %787 = vst [vmem:[%s123 + $0x4b0] sm:$0xff] %v531
      %788 = vst [vmem:[%s123 + $0x4b8] sm:$0xff] %v532
      %789 = vst [vmem:[%s123 + $0x4c0] sm:$0xff] %v533
      %790 = vst [vmem:[%s123 + $0x4c8] sm:$0xff] %v534
      %791 = vst [vmem:[%s123 + $0x4d0] sm:$0xff] %v535
      %792 = vst [vmem:[%s123 + $0x4d8] sm:$0xff] %v536
      %793 = vst [vmem:[%s123 + $0x4e0] sm:$0xff] %v537
      %794 = vst [vmem:[%s123 + $0x4e8] sm:$0xff] %v538
      %795 = vst [vmem:[%s123 + $0x4f0] sm:$0xff] %v539
      %796 = vst [vmem:[%s123 + $0x4f8] sm:$0xff] %v540
      %797 = vst [vmem:[%s123 + $0x500] sm:$0xff] %v541
      %798 = vst [vmem:[%s123 + $0x508] sm:$0xff] %v542
      %799 = vst [vmem:[%s123 + $0x510] sm:$0xff] %v543
      %800 = vst [vmem:[%s123 + $0x518] sm:$0xff] %v544
      %801 = vst [vmem:[%s123 + $0x520] sm:$0xff] %v545
      %802 = vst [vmem:[%s123 + $0x528] sm:$0xff] %v546
      %803 = vst [vmem:[%s123 + $0x530] sm:$0xff] %v547
      %804 = vst [vmem:[%s123 + $0x538] sm:$0xff] %v548
      %805 = vst [vmem:[%s123 + $0x540] sm:$0xff] %v549
      %806 = vst [vmem:[%s123 + $0x548] sm:$0xff] %v550
      %807 = vst [vmem:[%s123 + $0x550] sm:$0xff] %v551
      %808 = vst [vmem:[%s123 + $0x558] sm:$0xff] %v552
      %809 = vst [vmem:[%s123 + $0x560] sm:$0xff] %v553
      %810 = vst [vmem:[%s123 + $0x568] sm:$0xff] %v554
      %811 = vst [vmem:[%s123 + $0x570] sm:$0xff] %v555
      %812 = vst [vmem:[%s123 + $0x578] sm:$0xff] %v556
      %813 = vst [vmem:[%s123 + $0x580] sm:$0xff] %v557
      %814 = vst [vmem:[%s123 + $0x588] sm:$0xff] %v558
      %815 = vst [vmem:[%s123 + $0x590] sm:$0xff] %v559
      %816 = vst [vmem:[%s123 + $0x598] sm:$0xff] %v560
      %817 = vst [vmem:[%s123 + $0x5a0] sm:$0xff] %v561
      %818 = vst [vmem:[%s123 + $0x5a8] sm:$0xff] %v562
      %819 = vst [vmem:[%s123 + $0x5b0] sm:$0xff] %v563
      %820 = vst [vmem:[%s123 + $0x5b8] sm:$0xff] %v564
      %821 = vst [vmem:[%s123 + $0x5c0] sm:$0xff] %v565
      %822 = vst [vmem:[%s123 + $0x5c8] sm:$0xff] %v566
      %823 = vst [vmem:[%s123 + $0x5d0] sm:$0xff] %v567
      %824 = vst [vmem:[%s123 + $0x5d8] sm:$0xff] %v568
      %825 = vst [vmem:[%s123 + $0x5e0] sm:$0xff] %v569
      %826 = vst [vmem:[%s123 + $0x5e8] sm:$0xff] %v570
      %827 = vst [vmem:[%s123 + $0x5f0] sm:$0xff] %v571
      %828 = vst [vmem:[%s123 + $0x5f8] sm:$0xff] %v572
      %829 = vst [vmem:[%s123 + $0x600] sm:$0xff] %v573
      %830 = vst [vmem:[%s123 + $0x608] sm:$0xff] %v574
      %831 = vst [vmem:[%s123 + $0x610] sm:$0xff] %v575
      %832 = vst [vmem:[%s123 + $0x618] sm:$0xff] %v576
      %833 = vst [vmem:[%s123 + $0x620] sm:$0xff] %v577
      %834 = vst [vmem:[%s123 + $0x628] sm:$0xff] %v578
      %835 = vst [vmem:[%s123 + $0x630] sm:$0xff] %v579
      %836 = vst [vmem:[%s123 + $0x638] sm:$0xff] %v580
      %837 = vst [vmem:[%s123 + $0x640] sm:$0xff] %v581
      %838 = vst [vmem:[%s123 + $0x648] sm:$0xff] %v582
      %839 = vst [vmem:[%s123 + $0x650] sm:$0xff] %v583
      %840 = vst [vmem:[%s123 + $0x658] sm:$0xff] %v584
      %841 = vst [vmem:[%s123 + $0x660] sm:$0xff] %v585
      %842 = vst [vmem:[%s123 + $0x668] sm:$0xff] %v586
      %843 = vst [vmem:[%s123 + $0x670] sm:$0xff] %v587
      %844 = vst [vmem:[%s123 + $0x678] sm:$0xff] %v588
      %845 = vst [vmem:[%s123 + $0x680] sm:$0xff] %v589
      %846 = vst [vmem:[%s123 + $0x688] sm:$0xff] %v590
      %847 = vst [vmem:[%s123 + $0x690] sm:$0xff] %v591
      %848 = vst [vmem:[%s123 + $0x698] sm:$0xff] %v592
      %849 = vst [vmem:[%s123 + $0x6a0] sm:$0xff] %v593
      %850 = vst [vmem:[%s123 + $0x6a8] sm:$0xff] %v594
      %851 = vst [vmem:[%s123 + $0x6b0] sm:$0xff] %v595
      %852 = vst [vmem:[%s123 + $0x6b8] sm:$0xff] %v596
      %853 = vst [vmem:[%s123 + $0x6c0] sm:$0xff] %v597
      %854 = vst [vmem:[%s123 + $0x6c8] sm:$0xff] %v598
      %855 = vst [vmem:[%s123 + $0x6d0] sm:$0xff] %v599
      %856 = vst [vmem:[%s123 + $0x6d8] sm:$0xff] %v600
      %857 = vst [vmem:[%s123 + $0x6e0] sm:$0xff] %v601
      %858 = vst [vmem:[%s123 + $0x6e8] sm:$0xff] %v602
      %859 = vst [vmem:[%s123 + $0x6f0] sm:$0xff] %v603
      %860 = vst [vmem:[%s123 + $0x6f8] sm:$0xff] %v604
      %861 = vst [vmem:[%s123 + $0x700] sm:$0xff] %v605
      %862 = vst [vmem:[%s123 + $0x708] sm:$0xff] %v606
      %863 = vst [vmem:[%s123 + $0x710] sm:$0xff] %v607
      %864 = vst [vmem:[%s123 + $0x718] sm:$0xff] %v608
      %865 = vst [vmem:[%s123 + $0x720] sm:$0xff] %v609
      %866 = vst [vmem:[%s123 + $0x728] sm:$0xff] %v610
      %867 = vst [vmem:[%s123 + $0x730] sm:$0xff] %v611
      %868 = vst [vmem:[%s123 + $0x738] sm:$0xff] %v612
      %869 = vst [vmem:[%s123 + $0x740] sm:$0xff] %v613
      %870 = vst [vmem:[%s123 + $0x748] sm:$0xff] %v614
      %871 = vst [vmem:[%s123 + $0x750] sm:$0xff] %v615
      %872 = vst [vmem:[%s123 + $0x758] sm:$0xff] %v616
      %873 = vst [vmem:[%s123 + $0x760] sm:$0xff] %v617
      %874 = vst [vmem:[%s123 + $0x768] sm:$0xff] %v618
      %875 = vst [vmem:[%s123 + $0x770] sm:$0xff] %v619
      %876 = vst [vmem:[%s123 + $0x778] sm:$0xff] %v620
      %877 = vst [vmem:[%s123 + $0x780] sm:$0xff] %v621
      %878 = vst [vmem:[%s123 + $0x788] sm:$0xff] %v622
      %879 = vst [vmem:[%s123 + $0x790] sm:$0xff] %v623
      %880 = vst [vmem:[%s123 + $0x798] sm:$0xff] %v624
      %881 = vst [vmem:[%s123 + $0x7a0] sm:$0xff] %v625
      %882 = vst [vmem:[%s123 + $0x7a8] sm:$0xff] %v626
      %883 = vst [vmem:[%s123 + $0x7b0] sm:$0xff] %v627
      %884 = vst [vmem:[%s123 + $0x7b8] sm:$0xff] %v628
      %885 = vst [vmem:[%s123 + $0x7c0] sm:$0xff] %v629
      %886 = vst [vmem:[%s123 + $0x7c8] sm:$0xff] %v630
      %887 = vst [vmem:[%s123 + $0x7d0] sm:$0xff] %v631
      %888 = vst [vmem:[%s123 + $0x7d8] sm:$0xff] %v632
      %889 = vst [vmem:[%s123 + $0x7e0] sm:$0xff] %v633
      %890 = vst [vmem:[%s123 + $0x7e8] sm:$0xff] %v634
      %891 = vst [vmem:[%s123 + $0x7f0] sm:$0xff] %v635
      %892 = vst [vmem:[%s123 + $0x7f8] sm:$0xff] %v636
      %s893 = smul.u32 16, %s12
      %p894 = scmp.lt.s32.totalorder %s893, 31
      %s895 = scalar_select %p894, %s893, 31
      %s896 = smul.addr %s895, 16
      %s897 = smul.addr %s896, 8
      %s898 = scalar_lea.vmem %s1, %s897
      // Predicated region
      $region25: #{_lambda_.1} parent=23 // pred_check
        %p899 = pneg %p56
      $region26: #{_lambda_.1} parent=23 // pred_check_branch
        %901 = sbr.rel (%p899) target = $region28
      $region27: #{_lambda_.1} parent=23 // pred_region
        %s902 = smul.u32 16, %s12
      $region28: #{_lambda_.1} parent=23 // pred_fallthru
        _
    $region24: #{_lambda_.1} parent=5 // pred_fallthru
      _
    %p903 = scmp.le.s32.totalorder 2, %s7
    // Predicated region
    $region29: #{_lambda_.1} parent=5 // pred_check
      %p904 = pneg %p903
    $region30: #{_lambda_.1} parent=5 // pred_check_branch
      %906 = sbr.rel (%p904) target = $region32
    $region31: #{_lambda_.1} parent=5 // pred_region
      %s907 = ssub.s32 %s7, 2
      // Predicated region
      $region33: #{_lambda_.1} parent=31 // pred_check
        %p908 = pneg %p62
      $region34: #{_lambda_.1} parent=31 // pred_check_branch
        %910 = sbr.rel (%p908) target = $region36
      $region35: #{_lambda_.1} parent=31 // pred_region
        %s911 = smul.u32 16, %s13
        %p912 = scmp.lt.s32.totalorder %s911, 31
        %s913 = scalar_select %p912, %s911, 31
        %s914 = smul.addr %s913, 16
        %s915 = smul.addr %s914, 8
        %s916 = scalar_lea.vmem %s1, %s915
      $region36: #{_lambda_.1} parent=31 // pred_fallthru
        _
    $region32: #{_lambda_.1} parent=5 // pred_fallthru
      _
  $region6: #{_lambda_.1} parent=0 // loop_footer
    %s11 = sadd.s32 1, %s7
  $region7: #{_lambda_.1} parent=0 // loop_footer_branch
    %6 = sbr.rel target = $region3
  $region8: #{_lambda_.1} parent=0 // loop_exit
    _

</llo_original>
